<compile_context>
chip_gen: v6e
topology: v6e:2x2x1
jax: 0.10.0
libtpu: 0.0.40
codegen_flags: <defaults>
</compile_context>

<pallas_src>
import functools

import jax
import jax.numpy as jnp
from jax.experimental import pallas as pl
from jax.experimental.pallas import tpu as pltpu


_LANE = 128      # lane width / MXU N granularity


def _round_up(n, m):
    return (n + m - 1) // m * m


def _tpu_vmem_capacity_bytes():
    """Per-core VMEM capacity (64 MiB on v7x, 128 MiB on v5e/v6e); safe fallback."""
    try:
        cap = int(getattr(pltpu.get_tpu_info(), "vmem_capacity_bytes", 0))
        if cap > 0:
            return cap
    except Exception:
        pass
    return 64 << 20   # conservative (v7x per-TC)


def prepare_params(w1, b1, w2, b2, *, compute_dtype=jnp.bfloat16):
    """One-time weight prep (hoisted out of the per-call hot path).

    Casts weights to the MXU operand dtype and zero-pads the hidden / out MXU dims
    to 128-lane multiples.  Call once per model and reuse for every forward call so
    there is no per-call HBM pass over the weights.
    """
    in_feat, hidden = w1.shape
    out_feat = w2.shape[1]
    hidden_p = _round_up(hidden, _LANE)
    out_p = _round_up(out_feat, _LANE)
    cd = jnp.dtype(compute_dtype)

    w1_p = jnp.pad(w1.astype(cd), ((0, 0), (0, hidden_p - hidden)))
    b1_p = jnp.pad(b1.astype(jnp.float32), (0, hidden_p - hidden)).reshape(1, hidden_p)
    # Padded W2 rows multiply exactly-zero padded h columns -> results unchanged.
    w2_p = jnp.pad(w2.astype(cd), ((0, hidden_p - hidden), (0, out_p - out_feat)))
    b2_p = b2.astype(jnp.float32).reshape(1, out_feat)  # unpadded: added after the in-kernel slice

    return dict(w1=w1_p, b1=b1_p, w2=w2_p, b2=b2_p,
                in_feat=in_feat, hidden=hidden, hidden_p=hidden_p,
                out_feat=out_feat, out_p=out_p, compute_dtype=cd)


def _mlp_kernel(out_feat, x_ref, w1_ref, b1_ref, w2_ref, b2_ref, o_ref, h_ref):
    # Layer 1: x loads as f32 and is cast to the MXU dtype in-kernel (VPU op hidden
    # under the MXU); accumulate in f32, bias + ReLU in f32, store bf16 scratch.
    x = x_ref[...].astype(w1_ref.dtype)
    h = jnp.dot(x, w1_ref[...], preferred_element_type=jnp.float32)
    h_ref[...] = jnp.maximum(h + b1_ref[...], 0.0).astype(h_ref.dtype)
    # Layer 2: MXU N is the lane-padded out_p; slice back to out_feat before the
    # store so the output HBM write is only out_feat lanes wide.
    y = jnp.dot(h_ref[...], w2_ref[...], preferred_element_type=jnp.float32)
    o_ref[...] = (y[:, :out_feat] + b2_ref[...]).astype(o_ref.dtype)


def _xla_forward(x, prep):
    """Fallback for tiny batches where a pallas_call is pure launch overhead."""
    cd = prep["compute_dtype"]
    h = jnp.dot(x.astype(cd), prep["w1"], preferred_element_type=jnp.float32) + prep["b1"]
    h = jnp.maximum(h, 0.0).astype(cd)
    y = jnp.dot(h, prep["w2"], preferred_element_type=jnp.float32)
    return (y[:, :prep["out_feat"]] + prep["b2"]).astype(x.dtype)


def _choose_tb(batch, tb_max):
    if batch <= 16:
        return batch                               # single full-dim tile
    if batch <= 2 * tb_max:
        # >= 2 grid steps so both TensorCores get work under megacore sharding (v7x).
        return min(_round_up(pl.cdiv(batch, 2), 8), tb_max)
    return tb_max


def _build_call(*, batch, in_feat, hidden_p, out_feat, out_p, tb, cd, out_dtype,
                vmem_limit, cost, single_buffer_weights):
    if single_buffer_weights:
        def _resident(shape):
            # Constant index_map -> never re-fetched; single buffer halves VMEM use.
            return pl.BlockSpec(shape, lambda i: (0, 0), pipeline_mode=pl.Buffered(1))
    else:
        def _resident(shape):
            return pl.BlockSpec(shape, lambda i: (0, 0))

    return pl.pallas_call(
        functools.partial(_mlp_kernel, out_feat),
        out_shape=jax.ShapeDtypeStruct((batch, out_feat), out_dtype),
        grid=(pl.cdiv(batch, tb),),
        in_specs=[
            pl.BlockSpec((tb, in_feat), lambda i: (i, 0)),   # x: batch-tiled, double-buffered
            _resident((in_feat, hidden_p)),                  # W1: VMEM-resident
            _resident((1, hidden_p)),                        # b1
            _resident((hidden_p, out_p)),                    # W2
            _resident((1, out_feat)),                        # b2 (unpadded)
        ],
        out_specs=pl.BlockSpec((tb, out_feat), lambda i: (i, 0)),  # unpadded output store
        scratch_shapes=[pltpu.VMEM((tb, hidden_p), cd)],           # bf16 h scratch
        compiler_params=pltpu.CompilerParams(
            # TODO(synk): verify "parallel" shards the batch axis across TCs on v7x;
            # otherwise switch this axis to pltpu.CORE_PARALLEL.
            dimension_semantics=("parallel",),
            vmem_limit_bytes=vmem_limit,
        ),
        cost_estimate=cost,
    )


def classifier_forward_prepared(x, prep, *, force_pallas=False, min_pallas_batch=256):
    """Fused MLP forward relu(x @ w1 + b1) @ w2 + b2 using pre-prepared params."""
    batch, in_feat = x.shape
    assert in_feat == prep["in_feat"], (in_feat, prep["in_feat"])
    if not force_pallas and batch < min_pallas_batch:
        return _xla_forward(x, prep)

    hidden_p, out_feat, out_p = prep["hidden_p"], prep["out_feat"], prep["out_p"]
    cd = prep["compute_dtype"]

    vmem_cap = _tpu_vmem_capacity_bytes()
    budget = max(vmem_cap - (8 << 20), 16 << 20)       # headroom below physical VMEM
    tb_max = 1024 if vmem_cap >= (96 << 20) else 512   # 128-MiB chips vs v7x (64 MiB)
    tb = _choose_tb(batch, tb_max)

    xb = jnp.dtype(x.dtype).itemsize
    cb = cd.itemsize
    w_bytes = (in_feat * hidden_p + hidden_p * out_p) * cb + (hidden_p + out_feat) * 4

    def footprint(tb_):
        return (2 * tb_ * in_feat * xb          # x tiles (double-buffered, f32)
                + 2 * tb_ * out_feat * xb       # out tiles
                + 2 * w_bytes                   # weights (worst case: double-buffered)
                + tb_ * hidden_p * cb)          # h scratch (bf16)

    # Shrink the batch tile if the footprint would not fit this generation's VMEM.
    # TODO(synk): for very large in_feat (resident W1 >~ 20 MiB on v7x / ~48 MiB on
    # v6e) add a K-tiling grid axis over in_feat with a pl.when-initialized f32
    # accumulator instead of a single resident W1.
    while tb % 8 == 0 and tb > 64 and footprint(tb) > budget:
        tb = _round_up(tb // 2, 8)

    vmem_limit = int(min(max(footprint(tb) + (2 << 20), 32 << 20), budget))

    flops = 2 * batch * (in_feat * hidden_p + hidden_p * out_p)
    bytes_accessed = batch * in_feat * xb + w_bytes + batch * out_feat * xb
    cost = pl.CostEstimate(flops=flops, transcendentals=0, bytes_accessed=bytes_accessed)

    kwargs = dict(batch=batch, in_feat=in_feat, hidden_p=hidden_p, out_feat=out_feat,
                  out_p=out_p, tb=tb, cd=cd, out_dtype=x.dtype,
                  vmem_limit=vmem_limit, cost=cost)
    args = (x, prep["w1"], prep["b1"], prep["w2"], prep["b2"])
    try:
        return _build_call(single_buffer_weights=True, **kwargs)(*args)
    except Exception:
        # Fallback for jax versions without pl.Buffered single-buffering support.
        return _build_call(single_buffer_weights=False, **kwargs)(*args)


def classifier_forward(x, w1, b1, w2, b2, *, compute_dtype=jnp.bfloat16,
                       force_pallas=False, min_pallas_batch=256):
    """Convenience wrapper. For repeated calls, run prepare_params() once instead."""
    prep = prepare_params(w1, b1, w2, b2, compute_dtype=compute_dtype)
    return classifier_forward_prepared(x, prep, force_pallas=force_pallas,
                                       min_pallas_batch=min_pallas_batch)


def init_params(key, in_feat, out_feat, dtype=jnp.float32):
    """Deterministic init mimicking PyTorch nn.Linear default (uniform +/- 1/sqrt(fan_in))."""
    hidden = in_feat // 4
    k1, k2, k3, k4 = jax.random.split(key, 4)
    lim1 = 1.0 / (in_feat ** 0.5)
    lim2 = 1.0 / (hidden ** 0.5)
    w1 = jax.random.uniform(k1, (in_feat, hidden), dtype, -lim1, lim1)
    b1 = jax.random.uniform(k2, (hidden,), dtype, -lim1, lim1)
    w2 = jax.random.uniform(k3, (hidden, out_feat), dtype, -lim2, lim2)
    b2 = jax.random.uniform(k4, (out_feat,), dtype, -lim2, lim2)
    return w1, b1, w2, b2


def _ref_mixed(x, w1, b1, w2, b2, cd=jnp.bfloat16):
    """Pure-JAX reference with the same mixed precision as the kernel."""
    h = jnp.dot(x.astype(cd), w1.astype(cd), preferred_element_type=jnp.float32) + b1
    h = jnp.maximum(h, 0.0)
    return jnp.dot(h.astype(cd), w2.astype(cd), preferred_element_type=jnp.float32) + b2


if __name__ == "__main__":
    key = jax.random.PRNGKey(0)
    kx, kp = jax.random.split(key)

    # Small shapes consistent with the module: Linear(in) -> in//4 -> out.
    batch, in_feat, out_feat = 2, 32, 4          # hidden = 8
    x = jax.random.normal(kx, (batch, in_feat), jnp.float32)
    w1, b1, w2, b2 = init_params(kp, in_feat, out_feat)

    prep = prepare_params(w1, b1, w2, b2)        # one-time weight prep (hoisted)
    y = classifier_forward_prepared(x, prep, force_pallas=True)
    jax.block_until_ready(y)
    assert y.shape == (batch, out_feat)

    # Matched-precision reference (tight) and pure-f32 module semantics (loose, bf16 operands).
    y_ref = _ref_mixed(x, w1, b1, w2, b2)
    assert jnp.allclose(y, y_ref, atol=5e-3, rtol=5e-3), float(jnp.max(jnp.abs(y - y_ref)))
    y_f32 = jnp.maximum(x @ w1 + b1, 0.0) @ w2 + b2
    assert jnp.allclose(y, y_f32, atol=5e-2, rtol=5e-2)

    # Larger shape: ragged batch -> multi-step (>=2) grid, lane-padded hidden/W2,
    # unpadded output stores.
    batch2, in2, out2 = 1030, 256, 16            # hidden = 64
    kx2, kp2 = jax.random.split(jax.random.PRNGKey(1))
    x2 = jax.random.normal(kx2, (batch2, in2), jnp.float32)
    params2 = init_params(kp2, in2, out2)
    prep2 = prepare_params(*params2)
    y2 = classifier_forward_prepared(x2, prep2)
    jax.block_until_ready(y2)
    assert y2.shape == (batch2, out2)
    y2_ref = _ref_mixed(x2, *params2)
    assert jnp.allclose(y2, y2_ref, atol=5e-3, rtol=5e-3), float(jnp.max(jnp.abs(y2 - y2_ref)))

    print("KERNEL_OK")
</pallas_src>

<mosaic_0001>
module attributes {stable_mosaic.version = 11 : i64} {
  func.func @_mlp_kernel(%arg0: i32, %arg1: memref<2x32xf32, #tpu.memory_space<vmem>>, %arg2: memref<32x128xbf16, #tpu.memory_space<vmem>>, %arg3: memref<1x128xf32, #tpu.memory_space<vmem>>, %arg4: memref<128x128xbf16, #tpu.memory_space<vmem>>, %arg5: memref<1x4xf32, #tpu.memory_space<vmem>>, %arg6: memref<2x4xf32, #tpu.memory_space<vmem>>, %arg7: memref<2x128xbf16, #tpu.memory_space<vmem>>) attributes {dimension_semantics = [#tpu.dimension_semantics<parallel>], iteration_bounds = array<i64: 1>, scalar_prefetch = 0 : i64, scratch_operands = 1 : i64, tpu.core_type = #tpu.core_type<tc>, window_params = [{transform_indices = @transform_0, window_bounds = array<i64: 2, 32>}, {pipeline_mode = #tpu.pipeline_mode<synchronous>, transform_indices = @transform_1, window_bounds = array<i64: 32, 128>}, {pipeline_mode = #tpu.pipeline_mode<synchronous>, transform_indices = @transform_2, window_bounds = array<i64: 1, 128>}, {pipeline_mode = #tpu.pipeline_mode<synchronous>, transform_indices = @transform_3, window_bounds = array<i64: 128, 128>}, {pipeline_mode = #tpu.pipeline_mode<synchronous>, transform_indices = @transform_4, window_bounds = array<i64: 1, 4>}, {transform_indices = @transform_5, window_bounds = array<i64: 2, 4>}]} {
    %c0 = arith.constant 0 : index
    %c0_0 = arith.constant 0 : index
    %0 = vector.load %arg1[%c0, %c0_0] : memref<2x32xf32, #tpu.memory_space<vmem>>, vector<2x32xf32>
    %1 = arith.truncf %0 : vector<2x32xf32> to vector<2x32xbf16>
    %c0_1 = arith.constant 0 : index
    %c0_2 = arith.constant 0 : index
    %2 = vector.load %arg2[%c0_1, %c0_2] : memref<32x128xbf16, #tpu.memory_space<vmem>>, vector<32x128xbf16>
    %cst = arith.constant dense<0.000000e+00> : vector<2x128xf32>
    %3 = tpu.matmul %1, %2, %cst {dimension_numbers = #tpu.dot_dimension_numbers<[1], [0], [0], [1], [0, 0, 1, 1], [], []>} : vector<2x32xbf16>, vector<32x128xbf16>, vector<2x128xf32> -> vector<2x128xf32>
    %c0_3 = arith.constant 0 : index
    %c0_4 = arith.constant 0 : index
    %4 = vector.load %arg3[%c0_3, %c0_4] : memref<1x128xf32, #tpu.memory_space<vmem>>, vector<1x128xf32>
    %5 = vector.broadcast %4 : vector<1x128xf32> to vector<2x128xf32>
    %6 = arith.addf %3, %5 : vector<2x128xf32>
    %cst_5 = arith.constant 0.000000e+00 : f32
    %7 = vector.broadcast %cst_5 : f32 to vector<2x128xf32>
    %8 = arith.maximumf %6, %7 : vector<2x128xf32>
    %9 = arith.truncf %8 : vector<2x128xf32> to vector<2x128xbf16>
    %c0_6 = arith.constant 0 : index
    %c0_7 = arith.constant 0 : index
    %10 = vector.load %arg7[%c0_6, %c0_7] : memref<2x128xbf16, #tpu.memory_space<vmem>>, vector<2x128xbf16>
    tpu.vector_store %arg7[%c0_6, %c0_7], %9 {strides = array<i32>} : memref<2x128xbf16, #tpu.memory_space<vmem>>, vector<2x128xbf16>,
    %c0_8 = arith.constant 0 : index
    %c0_9 = arith.constant 0 : index
    %11 = vector.load %arg7[%c0_8, %c0_9] : memref<2x128xbf16, #tpu.memory_space<vmem>>, vector<2x128xbf16>
    %c0_10 = arith.constant 0 : index
    %c0_11 = arith.constant 0 : index
    %12 = vector.load %arg4[%c0_10, %c0_11] : memref<128x128xbf16, #tpu.memory_space<vmem>>, vector<128x128xbf16>
    %cst_12 = arith.constant dense<0.000000e+00> : vector<2x128xf32>
    %13 = tpu.matmul %11, %12, %cst_12 {dimension_numbers = #tpu.dot_dimension_numbers<[1], [0], [0], [1], [0, 0, 1, 1], [], []>} : vector<2x128xbf16>, vector<128x128xbf16>, vector<2x128xf32> -> vector<2x128xf32>
    %14 = vector.extract_strided_slice %13 {offsets = [0, 0], sizes = [2, 4], strides = [1, 1]} : vector<2x128xf32> to vector<2x4xf32>
    %c0_13 = arith.constant 0 : index
    %c0_14 = arith.constant 0 : index
    %15 = vector.load %arg5[%c0_13, %c0_14] : memref<1x4xf32, #tpu.memory_space<vmem>>, vector<1x4xf32>
    %16 = vector.broadcast %15 : vector<1x4xf32> to vector<2x4xf32>
    %17 = arith.addf %14, %16 : vector<2x4xf32>
    %c0_15 = arith.constant 0 : index
    %c0_16 = arith.constant 0 : index
    %18 = vector.load %arg6[%c0_15, %c0_16] : memref<2x4xf32, #tpu.memory_space<vmem>>, vector<2x4xf32>
    tpu.vector_store %arg6[%c0_15, %c0_16], %17 {strides = array<i32>} : memref<2x4xf32, #tpu.memory_space<vmem>>, vector<2x4xf32>,
    return
  }
  func.func @transform_0(%arg0: i32) -> (i32, i32) {
    %c0_i32 = arith.constant 0 : i32
    %c0_i32_0 = arith.constant 0 : i32
    return %arg0, %c0_i32 : i32, i32
  }
  func.func @transform_1(%arg0: i32) -> (i32, i32) {
    %c0_i32 = arith.constant 0 : i32
    %c0_i32_0 = arith.constant 0 : i32
    %c0_i32_1 = arith.constant 0 : i32
    return %c0_i32, %c0_i32_0 : i32, i32
  }
  func.func @transform_2(%arg0: i32) -> (i32, i32) {
    %c0_i32 = arith.constant 0 : i32
    %c0_i32_0 = arith.constant 0 : i32
    %c0_i32_1 = arith.constant 0 : i32
    return %c0_i32, %c0_i32_0 : i32, i32
  }
  func.func @transform_3(%arg0: i32) -> (i32, i32) {
    %c0_i32 = arith.constant 0 : i32
    %c0_i32_0 = arith.constant 0 : i32
    %c0_i32_1 = arith.constant 0 : i32
    return %c0_i32, %c0_i32_0 : i32, i32
  }
  func.func @transform_4(%arg0: i32) -> (i32, i32) {
    %c0_i32 = arith.constant 0 : i32
    %c0_i32_0 = arith.constant 0 : i32
    %c0_i32_1 = arith.constant 0 : i32
    return %c0_i32, %c0_i32_0 : i32, i32
  }
  func.func @transform_5(%arg0: i32) -> (i32, i32) {
    %c0_i32 = arith.constant 0 : i32
    %c0_i32_0 = arith.constant 0 : i32
    return %arg0, %c0_i32 : i32, i32
  }
}

module attributes {stable_mosaic.version = 11 : i64} {
  func.func @_mlp_kernel(%arg0: i32, %arg1: memref<2x32xf32, #tpu.memory_space<vmem>>, %arg2: memref<32x128xbf16, #tpu.memory_space<vmem>>, %arg3: memref<1x128xf32, #tpu.memory_space<vmem>>, %arg4: memref<128x128xbf16, #tpu.memory_space<vmem>>, %arg5: memref<1x4xf32, #tpu.memory_space<vmem>>, %arg6: memref<2x4xf32, #tpu.memory_space<vmem>>, %arg7: memref<2x128xbf16, #tpu.memory_space<vmem>>) attributes {dimension_semantics = [#tpu.dimension_semantics<parallel>], iteration_bounds = array<i64: 1>, scalar_prefetch = 0 : i64, scratch_operands = 1 : i64, tpu.core_type = #tpu.core_type<tc>, window_params = [{transform_indices = @transform_0, window_bounds = array<i64: 2, 32>}, {pipeline_mode = #tpu.pipeline_mode<synchronous>, transform_indices = @transform_1, window_bounds = array<i64: 32, 128>}, {pipeline_mode = #tpu.pipeline_mode<synchronous>, transform_indices = @transform_2, window_bounds = array<i64: 1, 128>}, {pipeline_mode = #tpu.pipeline_mode<synchronous>, transform_indices = @transform_3, window_bounds = array<i64: 128, 128>}, {pipeline_mode = #tpu.pipeline_mode<synchronous>, transform_indices = @transform_4, window_bounds = array<i64: 1, 4>}, {transform_indices = @transform_5, window_bounds = array<i64: 2, 4>}]} {
    %c0 = arith.constant 0 : index
    %c0_0 = arith.constant 0 : index
    %0 = vector.load %arg1[%c0, %c0_0] : memref<2x32xf32, #tpu.memory_space<vmem>>, vector<2x32xf32>
    %1 = arith.truncf %0 : vector<2x32xf32> to vector<2x32xbf16>
    %c0_1 = arith.constant 0 : index
    %c0_2 = arith.constant 0 : index
    %2 = vector.load %arg2[%c0_1, %c0_2] : memref<32x128xbf16, #tpu.memory_space<vmem>>, vector<32x128xbf16>
    %cst = arith.constant dense<0.000000e+00> : vector<2x128xf32>
    %3 = tpu.matmul %1, %2, %cst {dimension_numbers = #tpu.dot_dimension_numbers<[1], [0], [0], [1], [0, 0, 1, 1], [], []>} : vector<2x32xbf16>, vector<32x128xbf16>, vector<2x128xf32> -> vector<2x128xf32>
    %c0_3 = arith.constant 0 : index
    %c0_4 = arith.constant 0 : index
    %4 = vector.load %arg3[%c0_3, %c0_4] : memref<1x128xf32, #tpu.memory_space<vmem>>, vector<1x128xf32>
    %5 = vector.broadcast %4 : vector<1x128xf32> to vector<2x128xf32>
    %6 = arith.addf %3, %5 : vector<2x128xf32>
    %cst_5 = arith.constant 0.000000e+00 : f32
    %7 = vector.broadcast %cst_5 : f32 to vector<2x128xf32>
    %8 = arith.maximumf %6, %7 : vector<2x128xf32>
    %9 = arith.truncf %8 : vector<2x128xf32> to vector<2x128xbf16>
    %c0_6 = arith.constant 0 : index
    %c0_7 = arith.constant 0 : index
    %10 = vector.load %arg7[%c0_6, %c0_7] : memref<2x128xbf16, #tpu.memory_space<vmem>>, vector<2x128xbf16>
    tpu.vector_store %arg7[%c0_6, %c0_7], %9 {strides = array<i32>} : memref<2x128xbf16, #tpu.memory_space<vmem>>, vector<2x128xbf16>,
    %c0_8 = arith.constant 0 : index
    %c0_9 = arith.constant 0 : index
    %11 = vector.load %arg7[%c0_8, %c0_9] : memref<2x128xbf16, #tpu.memory_space<vmem>>, vector<2x128xbf16>
    %c0_10 = arith.constant 0 : index
    %c0_11 = arith.constant 0 : index
    %12 = vector.load %arg4[%c0_10, %c0_11] : memref<128x128xbf16, #tpu.memory_space<vmem>>, vector<128x128xbf16>
    %cst_12 = arith.constant dense<0.000000e+00> : vector<2x128xf32>
    %13 = tpu.matmul %11, %12, %cst_12 {dimension_numbers = #tpu.dot_dimension_numbers<[1], [0], [0], [1], [0, 0, 1, 1], [], []>} : vector<2x128xbf16>, vector<128x128xbf16>, vector<2x128xf32> -> vector<2x128xf32>
    %14 = vector.extract_strided_slice %13 {offsets = [0, 0], sizes = [2, 4], strides = [1, 1]} : vector<2x128xf32> to vector<2x4xf32>
    %c0_13 = arith.constant 0 : index
    %c0_14 = arith.constant 0 : index
    %15 = vector.load %arg5[%c0_13, %c0_14] : memref<1x4xf32, #tpu.memory_space<vmem>>, vector<1x4xf32>
    %16 = vector.broadcast %15 : vector<1x4xf32> to vector<2x4xf32>
    %17 = arith.addf %14, %16 : vector<2x4xf32>
    %c0_15 = arith.constant 0 : index
    %c0_16 = arith.constant 0 : index
    %18 = vector.load %arg6[%c0_15, %c0_16] : memref<2x4xf32, #tpu.memory_space<vmem>>, vector<2x4xf32>
    tpu.vector_store %arg6[%c0_15, %c0_16], %17 {strides = array<i32>} : memref<2x4xf32, #tpu.memory_space<vmem>>, vector<2x4xf32>,
    return
  }
  func.func @transform_0(%arg0: i32) -> (i32, i32) {
    %c0_i32 = arith.constant 0 : i32
    %c0_i32_0 = arith.constant 0 : i32
    return %arg0, %c0_i32 : i32, i32
  }
  func.func @transform_1(%arg0: i32) -> (i32, i32) {
    %c0_i32 = arith.constant 0 : i32
    %c0_i32_0 = arith.constant 0 : i32
    %c0_i32_1 = arith.constant 0 : i32
    return %c0_i32, %c0_i32_0 : i32, i32
  }
  func.func @transform_2(%arg0: i32) -> (i32, i32) {
    %c0_i32 = arith.constant 0 : i32
    %c0_i32_0 = arith.constant 0 : i32
    %c0_i32_1 = arith.constant 0 : i32
    return %c0_i32, %c0_i32_0 : i32, i32
  }
  func.func @transform_3(%arg0: i32) -> (i32, i32) {
    %c0_i32 = arith.constant 0 : i32
    %c0_i32_0 = arith.constant 0 : i32
    %c0_i32_1 = arith.constant 0 : i32
    return %c0_i32, %c0_i32_0 : i32, i32
  }
  func.func @transform_4(%arg0: i32) -> (i32, i32) {
    %c0_i32 = arith.constant 0 : i32
    %c0_i32_0 = arith.constant 0 : i32
    %c0_i32_1 = arith.constant 0 : i32
    return %c0_i32, %c0_i32_0 : i32, i32
  }
  func.func @transform_5(%arg0: i32) -> (i32, i32) {
    %c0_i32 = arith.constant 0 : i32
    %c0_i32_0 = arith.constant 0 : i32
    return %arg0, %c0_i32 : i32, i32
  }
}

</mosaic_0001>

<llo_original>
// kernel: tpu_custom_call.1
$region0: #{tpu_custom_call.1}
  #allocation0 [shape = 'u32[]', space=smem, size = 0x4, offset = 0x4, fixed_abs, tag = 'smem constant byte address 0x4 - core index']
  #allocation1 [shape = 'u32[144,128]{1,0:T(1,128)}', space=vmem, size = 0x12000, scoped, tag = 'internal scratch']
  #allocation2 [shape = 'bf16[2,128]{1,0:T(2,128)(2,1)}', space=vmem, size = 0x200, scoped, tag = 'scratch operand']
  %s0 = inlined_call_operand.hbm [shape: f32[2,32], index: 0, kind: input, shape index: {}]
  %s1 = inlined_call_operand.hbm [shape: bf16[32,128], index: 1, kind: input, shape index: {}]
  %s2 = inlined_call_operand.vmem [shape: f32[1,128], index: 2, kind: input, shape index: {}]
  %s3 = inlined_call_operand.hbm [shape: bf16[128,128], index: 3, kind: input, shape index: {}]
  %s4 = inlined_call_operand.vmem [shape: f32[1,4], index: 4, kind: input, shape index: {}]
  %s5 = inlined_call_operand.hbm [shape: f32[2,4], index: 5, kind: output, shape index: {}]
  %s6 = sld [smem:[#allocation0]]
  $region42: #{tpu_custom_call.1} parent=0
    _
  %s8 = ssub.s32 1, %s6
  %s9 = scalar_select 0, %s8, %s6
  $region1: #{tpu_custom_call.1} parent=0
    #allocation3 [shape = 'u8[1024]{0}', space=vmem, size = 0x400, scoped, tag = 'input window, operand 0, single buffered']
    #allocation4 [shape = 's32[1]{0}', space=sflag, size = 0x4, scoped, tag = 'scoped memory for tpu_custom_call.1']
    #allocation5 [shape = 's32[1]{0}', space=sflag, size = 0x4, scoped, tag = 'scoped memory for tpu_custom_call.1']
    #allocation6 [shape = 'u8[8192]{0}', space=vmem, size = 0x2000, scoped, tag = 'input window, operand 1, single buffered']
    #allocation7 [shape = 's32[1]{0}', space=sflag, size = 0x4, scoped, tag = 'scoped memory for tpu_custom_call.1']
    #allocation8 [shape = 'u8[32768]{0}', space=vmem, size = 0x8000, scoped, tag = 'input window, operand 3, single buffered']
    #allocation9 [shape = 'u8[1024]{0}', space=vmem, size = 0x400, scoped, tag = 'output window, operand 0, single buffered']
    %10 = vsyncpa [#allocation4], 0
    %11 = vsyncpa [#allocation7], 0
    %12 = vsyncpa [#allocation5], 0
    // Predicated region
    $region2: #{tpu_custom_call.1} parent=1 // pred_check
      _
    $region3: #{tpu_custom_call.1} parent=1 // pred_check_branch
      %14 = sbr.rel (0) target = $region5
    $region4: #{tpu_custom_call.1} parent=1 // pred_region
      %s16 = ssub.s32 32, 32
      %17 = vsyncadd [#allocation4], %s16
      %s19 = sshll.u32 [#allocation3], 4
      %s20 = int_to_ptr.vmem [resolvable:$true] %s19
      %22 = dma.hbm_to_vmem [thread:$0]  %s0, 32, %s20, [#allocation4]
    $region5: #{tpu_custom_call.1} parent=1 // pred_fallthru
      _
    // Predicated region
    $region6: #{tpu_custom_call.1} parent=1 // pred_check
      _
    $region7: #{tpu_custom_call.1} parent=1 // pred_check_branch
      %24 = sbr.rel (0) target = $region9
    $region8: #{tpu_custom_call.1} parent=1 // pred_region
      %s26 = ssub.s32 256, 256
      %27 = vsyncadd [#allocation7], %s26
      %s28 = sshll.u32 [#allocation6], 4
      %s29 = int_to_ptr.vmem [resolvable:$true] %s28
      %34 = dma.hbm_to_vmem [thread:$0]  %s1, 256, %s29, [#allocation7], 64, 64, 4
    $region9: #{tpu_custom_call.1} parent=1 // pred_fallthru
      _
    // Predicated region
    $region10: #{tpu_custom_call.1} parent=1 // pred_check
      _
    $region11: #{tpu_custom_call.1} parent=1 // pred_check_branch
      %36 = sbr.rel (0) target = $region13
    $region12: #{tpu_custom_call.1} parent=1 // pred_region
      _
    $region13: #{tpu_custom_call.1} parent=1 // pred_fallthru
      _
    // Predicated region
    $region14: #{tpu_custom_call.1} parent=1 // pred_check
      _
    $region15: #{tpu_custom_call.1} parent=1 // pred_check_branch
      %38 = sbr.rel (0) target = $region17
    $region16: #{tpu_custom_call.1} parent=1 // pred_region
      %s40 = ssub.s32 1024, 1024
      %41 = vsyncadd [#allocation7], %s40
      %s42 = sshll.u32 [#allocation8], 4
      %s43 = int_to_ptr.vmem [resolvable:$true] %s42
      %48 = dma.hbm_to_vmem [thread:$0]  %s3, 1024, %s43, [#allocation7], 64, 64, 4
    $region17: #{tpu_custom_call.1} parent=1 // pred_fallthru
      _
    // Predicated region
    $region18: #{tpu_custom_call.1} parent=1 // pred_check
      _
    $region19: #{tpu_custom_call.1} parent=1 // pred_check_branch
      %50 = sbr.rel (0) target = $region21
    $region20: #{tpu_custom_call.1} parent=1 // pred_region
      _
    $region21: #{tpu_custom_call.1} parent=1 // pred_fallthru
      _
    // Predicated region
    $region22: #{tpu_custom_call.1} parent=1 // pred_check
      _
    $region23: #{tpu_custom_call.1} parent=1 // pred_check_branch
      %52 = sbr.rel (0) target = $region25
    $region24: #{tpu_custom_call.1} parent=1 // pred_region
      %53 = dma.done [#allocation4], 32
    $region25: #{tpu_custom_call.1} parent=1 // pred_fallthru
      _
    // Predicated region
    $region26: #{tpu_custom_call.1} parent=1 // pred_check
      _
    $region27: #{tpu_custom_call.1} parent=1 // pred_check_branch
      %55 = sbr.rel (0) target = $region29
    $region28: #{tpu_custom_call.1} parent=1 // pred_region
      %56 = dma.done [#allocation7], 256
    $region29: #{tpu_custom_call.1} parent=1 // pred_fallthru
      _
    // Predicated region
    $region30: #{tpu_custom_call.1} parent=1 // pred_check
      _
    $region31: #{tpu_custom_call.1} parent=1 // pred_check_branch
      %58 = sbr.rel (0) target = $region33
    $region32: #{tpu_custom_call.1} parent=1 // pred_region
      %59 = dma.done [#allocation7], 1024
    $region33: #{tpu_custom_call.1} parent=1 // pred_fallthru
      _
    %v61 = vld [vmem:[#allocation3] sm:$0x3]
    %v62 = vpack.c.bf16 %v61, %v61
    %v63 = vld [vmem:[#allocation6] sm:$0xf]
    %v64 = vld [vmem:[#allocation6 + $0x4] sm:$0xf]
    %v65 = vld [vmem:[#allocation6 + $0x8] sm:$0xf]
    %v66 = vld [vmem:[#allocation6 + $0xc] sm:$0xf]
    %v67 = vld [vmem:[%s2] sm:$0x1]
    %v69 = vlaneseq
    %v70 = vshrl.u32 %v69, 7
    %v71 = vsub.s32 0, %v70
    %v72 = vrot.slane %v67, %v71
    %v78 = vunpack.c.l.b16 %v63
    %v79 = vunpack.c.l.b16 %v64
    %v80 = vunpack.c.l.b16 %v65
    %v81 = vunpack.c.l.b16 %v66
    %v82 = vpack.c.b16 %v79, %v78
    %v83 = vpack.c.b16 %v81, %v80
    %vm86 = vcmask 261120
    %v88 = vsel %vm86, %v62, 0
    %90 = vmatprep.subr.bf16.mxu0 0
    %91 = vmatpush1.bf16.msra.mxu0 0
    %92 = vmatprep.subr.bf16.mxu0 0
    %93 = vmatpush1.bf16.msra.mxu0 0
    %94 = vmatprep.subr.bf16.mxu0 0
    %95 = vmatpush1.bf16.msra.mxu0 0
    %96 = vmatprep.subr.bf16.mxu0 0
    %97 = vmatpush1.bf16.msra.mxu0 0
    %98 = vmatprep.subr.bf16.mxu0 0
    %99 = vmatpush1.bf16.msra.mxu0 0
    %100 = vmatprep.subr.bf16.mxu0 0
    %101 = vmatpush1.bf16.msra.mxu0 0
    %102 = vmatprep.subr.bf16.mxu0 0
    %103 = vmatpush1.bf16.msra.mxu0 %v83
    %104 = vmatprep.subr.bf16.mxu0 0
    %105 = vmatpush1.bf16.msra.mxu0 %v82
    %106 = vmatprep.subr.bf16.mxu0 0
    %107 = vmatpush2.bf16.msra.mxu0 0
    %108 = vmatprep.subr.bf16.mxu0 0
    %109 = vmatpush2.bf16.msra.mxu0 0
    %110 = vmatprep.subr.bf16.mxu0 0
    %111 = vmatpush2.bf16.msra.mxu0 0
    %112 = vmatprep.subr.bf16.mxu0 0
    %113 = vmatpush2.bf16.msra.mxu0 0
    %114 = vmatprep.subr.bf16.mxu0 0
    %115 = vmatpush2.bf16.msra.mxu0 0
    %116 = vmatprep.subr.bf16.mxu0 0
    %117 = vmatpush2.bf16.msra.mxu0 0
    %118 = vmatprep.subr.bf16.mxu0 0
    %119 = vmatpush2.bf16.msra.mxu0 0
    %120 = vmatprep.subr.bf16.mxu0 0
    %121 = vmatpush2.bf16.msra.mxu0 0
    %122 = vmatprep.mubr.bf16.mxu0 0
    %123 = vmatmul.mubr.bf16.gmra.mxu0 %v88
    %v124 = vpop.f32.mrf.mxu0
    %v125 = vadd.f32 %v72, %v124
    %v126 = vpop.f32.mrf.mxu0
    %v127 = vpop.f32.mrf.mxu0
    %v128 = vpop.f32.mrf.mxu0
    %129 = vdwg.mxu0
    %v130 = vmax.f32 %v125, 0.0
    %v131 = vpack.c.bf16 %v130, %v130
    %132 = vst [vmem:[#allocation2] sm:$0x1] %v131
    %v133 = vld [vmem:[#allocation2] sm:$0x1]
    %v134 = vld [vmem:[#allocation8] sm:$0xf]
    %v135 = vld [vmem:[#allocation8 + $0x4] sm:$0xf]
    %v136 = vld [vmem:[#allocation8 + $0x8] sm:$0xf]
    %v137 = vld [vmem:[#allocation8 + $0xc] sm:$0xf]
    %v138 = vld [vmem:[#allocation8 + $0x10] sm:$0xf]
    %v139 = vld [vmem:[#allocation8 + $0x14] sm:$0xf]
    %v140 = vld [vmem:[#allocation8 + $0x18] sm:$0xf]
    %v141 = vld [vmem:[#allocation8 + $0x1c] sm:$0xf]
    %v142 = vld [vmem:[#allocation8 + $0x20] sm:$0xf]
    %v143 = vld [vmem:[#allocation8 + $0x24] sm:$0xf]
    %v144 = vld [vmem:[#allocation8 + $0x28] sm:$0xf]
    %v145 = vld [vmem:[#allocation8 + $0x2c] sm:$0xf]
    %v146 = vld [vmem:[#allocation8 + $0x30] sm:$0xf]
    %v147 = vld [vmem:[#allocation8 + $0x34] sm:$0xf]
    %v148 = vld [vmem:[#allocation8 + $0x38] sm:$0xf]
    %v149 = vld [vmem:[#allocation8 + $0x3c] sm:$0xf]
    %v166 = vunpack.c.l.b16 %v134
    %v167 = vunpack.c.l.b16 %v135
    %v168 = vunpack.c.l.b16 %v136
    %v169 = vunpack.c.l.b16 %v137
    %v170 = vunpack.c.l.b16 %v138
    %v171 = vunpack.c.l.b16 %v139
    %v172 = vunpack.c.l.b16 %v140
    %v173 = vunpack.c.l.b16 %v141
    %v174 = vunpack.c.l.b16 %v142
    %v175 = vunpack.c.l.b16 %v143
    %v176 = vunpack.c.l.b16 %v144
    %v177 = vunpack.c.l.b16 %v145
    %v178 = vunpack.c.l.b16 %v146
    %v179 = vunpack.c.l.b16 %v147
    %v180 = vunpack.c.l.b16 %v148
    %v181 = vunpack.c.l.b16 %v149
    %v182 = vpack.c.b16 %v167, %v166
    %v183 = vpack.c.b16 %v169, %v168
    %v184 = vpack.c.b16 %v171, %v170
    %v185 = vpack.c.b16 %v173, %v172
    %v186 = vpack.c.b16 %v175, %v174
    %v187 = vpack.c.b16 %v177, %v176
    %v188 = vpack.c.b16 %v179, %v178
    %v189 = vpack.c.b16 %v181, %v180
    %198 = vmatprep.subr.bf16.mxu0 0
    %199 = vmatpush1.bf16.msra.mxu0 %v189
    %200 = vmatprep.subr.bf16.mxu0 0
    %201 = vmatpush1.bf16.msra.mxu0 %v188
    %202 = vmatprep.subr.bf16.mxu0 0
    %203 = vmatpush1.bf16.msra.mxu0 %v187
    %204 = vmatprep.subr.bf16.mxu0 0
    %205 = vmatpush1.bf16.msra.mxu0 %v186
    %206 = vmatprep.subr.bf16.mxu0 0
    %207 = vmatpush1.bf16.msra.mxu0 %v185
    %208 = vmatprep.subr.bf16.mxu0 0
    %209 = vmatpush1.bf16.msra.mxu0 %v184
    %210 = vmatprep.subr.bf16.mxu0 0
    %211 = vmatpush1.bf16.msra.mxu0 %v183
    %212 = vmatprep.subr.bf16.mxu0 0
    %213 = vmatpush1.bf16.msra.mxu0 %v182
    %214 = vmatprep.subr.bf16.mxu0 0
    %215 = vmatpush2.bf16.msra.mxu0 0
    %216 = vmatprep.subr.bf16.mxu0 0
    %217 = vmatpush2.bf16.msra.mxu0 0
    %218 = vmatprep.subr.bf16.mxu0 0
    %219 = vmatpush2.bf16.msra.mxu0 0
    %220 = vmatprep.subr.bf16.mxu0 0
    %221 = vmatpush2.bf16.msra.mxu0 0
    %222 = vmatprep.subr.bf16.mxu0 0
    %223 = vmatpush2.bf16.msra.mxu0 0
    %224 = vmatprep.subr.bf16.mxu0 0
    %225 = vmatpush2.bf16.msra.mxu0 0
    %226 = vmatprep.subr.bf16.mxu0 0
    %227 = vmatpush2.bf16.msra.mxu0 0
    %228 = vmatprep.subr.bf16.mxu0 0
    %229 = vmatpush2.bf16.msra.mxu0 0
    %230 = vmatprep.mubr.bf16.mxu0 0
    %231 = vmatmul.mubr.bf16.gmra.mxu0 %v133
    %v232 = vpop.f32.mrf.mxu0
    %v233 = vadd.f32 0.0, %v232
    %v234 = vpop.f32.mrf.mxu0
    %v235 = vpop.f32.mrf.mxu0
    %v236 = vpop.f32.mrf.mxu0
    %237 = vdwg.mxu0
    %v238 = vld [vmem:[%s4] sm:$0x1]
    %v240 = vlaneseq
    %v241 = vshrl.u32 %v240, 7
    %v242 = vsub.s32 0, %v241
    %v243 = vrot.slane %v238, %v242
    %v245 = vadd.f32 %v233, %v243
    %vm246 = vcmask 25600
    %247 = vst.msk [vmem:[#allocation9] sm:$0x3] %vm246, %v245
    // Predicated region
    $region34: #{tpu_custom_call.1} parent=1 // pred_check
      _
    $region35: #{tpu_custom_call.1} parent=1 // pred_check_branch
      %249 = sbr.rel (0) target = $region37
    $region36: #{tpu_custom_call.1} parent=1 // pred_region
      %s251 = ssub.s32 32, 32
      %252 = vsyncadd [#allocation5], %s251
      %s254 = sshll.u32 [#allocation9], 4
      %s255 = int_to_ptr.vmem [resolvable:$true] %s254
      %257 = dma.vmem_to_hbm [thread:$0]  %s255, 32, %s5, [#allocation5]
    $region37: #{tpu_custom_call.1} parent=1 // pred_fallthru
      _
    // Predicated region
    $region38: #{tpu_custom_call.1} parent=1 // pred_check
      _
    $region39: #{tpu_custom_call.1} parent=1 // pred_check_branch
      %259 = sbr.rel (0) target = $region41
    $region40: #{tpu_custom_call.1} parent=1 // pred_region
      %260 = dma.done [#allocation5], 32
    $region41: #{tpu_custom_call.1} parent=1 // pred_fallthru
      _
    %261 = vsyncpa [#allocation4], 1
    %262 = vsyncpa [#allocation7], 1
    %263 = vsyncpa [#allocation5], 1

// kernel: tpu_custom_call.1
$region0: #{tpu_custom_call.1}
  #allocation0 [shape = 'u32[]', space=smem, size = 0x4, offset = 0x4, fixed_abs, tag = 'smem constant byte address 0x4 - core index']
  #allocation1 [shape = 'u32[144,128]{1,0:T(1,128)}', space=vmem, size = 0x12000, scoped, tag = 'internal scratch']
  #allocation2 [shape = 'bf16[2,128]{1,0:T(2,128)(2,1)}', space=vmem, size = 0x200, scoped, tag = 'scratch operand']
  %s0 = inlined_call_operand.hbm [shape: f32[2,32], index: 0, kind: input, shape index: {}]
  %s1 = inlined_call_operand.hbm [shape: bf16[32,128], index: 1, kind: input, shape index: {}]
  %s2 = inlined_call_operand.vmem [shape: f32[1,128], index: 2, kind: input, shape index: {}]
  %s3 = inlined_call_operand.hbm [shape: bf16[128,128], index: 3, kind: input, shape index: {}]
  %s4 = inlined_call_operand.vmem [shape: f32[1,4], index: 4, kind: input, shape index: {}]
  %s5 = inlined_call_operand.hbm [shape: f32[2,4], index: 5, kind: output, shape index: {}]
  %s6 = sld [smem:[#allocation0]]
  $region42: #{tpu_custom_call.1} parent=0
    _
  %s8 = ssub.s32 1, %s6
  %s9 = scalar_select 0, %s8, %s6
  $region1: #{tpu_custom_call.1} parent=0
    #allocation3 [shape = 'u8[1024]{0}', space=vmem, size = 0x400, scoped, tag = 'input window, operand 0, single buffered']
    #allocation4 [shape = 's32[1]{0}', space=sflag, size = 0x4, scoped, tag = 'scoped memory for tpu_custom_call.1']
    #allocation5 [shape = 's32[1]{0}', space=sflag, size = 0x4, scoped, tag = 'scoped memory for tpu_custom_call.1']
    #allocation6 [shape = 'u8[8192]{0}', space=vmem, size = 0x2000, scoped, tag = 'input window, operand 1, single buffered']
    #allocation7 [shape = 's32[1]{0}', space=sflag, size = 0x4, scoped, tag = 'scoped memory for tpu_custom_call.1']
    #allocation8 [shape = 'u8[32768]{0}', space=vmem, size = 0x8000, scoped, tag = 'input window, operand 3, single buffered']
    #allocation9 [shape = 'u8[1024]{0}', space=vmem, size = 0x400, scoped, tag = 'output window, operand 0, single buffered']
    %10 = vsyncpa [#allocation4], 0
    %11 = vsyncpa [#allocation7], 0
    %12 = vsyncpa [#allocation5], 0
    // Predicated region
    $region2: #{tpu_custom_call.1} parent=1 // pred_check
      _
    $region3: #{tpu_custom_call.1} parent=1 // pred_check_branch
      %14 = sbr.rel (0) target = $region5
    $region4: #{tpu_custom_call.1} parent=1 // pred_region
      %s16 = ssub.s32 32, 32
      %17 = vsyncadd [#allocation4], %s16
      %s19 = sshll.u32 [#allocation3], 4
      %s20 = int_to_ptr.vmem [resolvable:$true] %s19
      %22 = dma.hbm_to_vmem [thread:$0]  %s0, 32, %s20, [#allocation4]
    $region5: #{tpu_custom_call.1} parent=1 // pred_fallthru
      _
    // Predicated region
    $region6: #{tpu_custom_call.1} parent=1 // pred_check
      _
    $region7: #{tpu_custom_call.1} parent=1 // pred_check_branch
      %24 = sbr.rel (0) target = $region9
    $region8: #{tpu_custom_call.1} parent=1 // pred_region
      %s26 = ssub.s32 256, 256
      %27 = vsyncadd [#allocation7], %s26
      %s28 = sshll.u32 [#allocation6], 4
      %s29 = int_to_ptr.vmem [resolvable:$true] %s28
      %34 = dma.hbm_to_vmem [thread:$0]  %s1, 256, %s29, [#allocation7], 64, 64, 4
    $region9: #{tpu_custom_call.1} parent=1 // pred_fallthru
      _
    // Predicated region
    $region10: #{tpu_custom_call.1} parent=1 // pred_check
      _
    $region11: #{tpu_custom_call.1} parent=1 // pred_check_branch
      %36 = sbr.rel (0) target = $region13
    $region12: #{tpu_custom_call.1} parent=1 // pred_region
      _
    $region13: #{tpu_custom_call.1} parent=1 // pred_fallthru
      _
    // Predicated region
    $region14: #{tpu_custom_call.1} parent=1 // pred_check
      _
    $region15: #{tpu_custom_call.1} parent=1 // pred_check_branch
      %38 = sbr.rel (0) target = $region17
    $region16: #{tpu_custom_call.1} parent=1 // pred_region
      %s40 = ssub.s32 1024, 1024
      %41 = vsyncadd [#allocation7], %s40
      %s42 = sshll.u32 [#allocation8], 4
      %s43 = int_to_ptr.vmem [resolvable:$true] %s42
      %48 = dma.hbm_to_vmem [thread:$0]  %s3, 1024, %s43, [#allocation7], 64, 64, 4
    $region17: #{tpu_custom_call.1} parent=1 // pred_fallthru
      _
    // Predicated region
    $region18: #{tpu_custom_call.1} parent=1 // pred_check
      _
    $region19: #{tpu_custom_call.1} parent=1 // pred_check_branch
      %50 = sbr.rel (0) target = $region21
    $region20: #{tpu_custom_call.1} parent=1 // pred_region
      _
    $region21: #{tpu_custom_call.1} parent=1 // pred_fallthru
      _
    // Predicated region
    $region22: #{tpu_custom_call.1} parent=1 // pred_check
      _
    $region23: #{tpu_custom_call.1} parent=1 // pred_check_branch
      %52 = sbr.rel (0) target = $region25
    $region24: #{tpu_custom_call.1} parent=1 // pred_region
      %53 = dma.done [#allocation4], 32
    $region25: #{tpu_custom_call.1} parent=1 // pred_fallthru
      _
    // Predicated region
    $region26: #{tpu_custom_call.1} parent=1 // pred_check
      _
    $region27: #{tpu_custom_call.1} parent=1 // pred_check_branch
      %55 = sbr.rel (0) target = $region29
    $region28: #{tpu_custom_call.1} parent=1 // pred_region
      %56 = dma.done [#allocation7], 256
    $region29: #{tpu_custom_call.1} parent=1 // pred_fallthru
      _
    // Predicated region
    $region30: #{tpu_custom_call.1} parent=1 // pred_check
      _
    $region31: #{tpu_custom_call.1} parent=1 // pred_check_branch
      %58 = sbr.rel (0) target = $region33
    $region32: #{tpu_custom_call.1} parent=1 // pred_region
      %59 = dma.done [#allocation7], 1024
    $region33: #{tpu_custom_call.1} parent=1 // pred_fallthru
      _
    %v61 = vld [vmem:[#allocation3] sm:$0x3]
    %v62 = vpack.c.bf16 %v61, %v61
    %v63 = vld [vmem:[#allocation6] sm:$0xf]
    %v64 = vld [vmem:[#allocation6 + $0x4] sm:$0xf]
    %v65 = vld [vmem:[#allocation6 + $0x8] sm:$0xf]
    %v66 = vld [vmem:[#allocation6 + $0xc] sm:$0xf]
    %v67 = vld [vmem:[%s2] sm:$0x1]
    %v69 = vlaneseq
    %v70 = vshrl.u32 %v69, 7
    %v71 = vsub.s32 0, %v70
    %v72 = vrot.slane %v67, %v71
    %v78 = vunpack.c.l.b16 %v63
    %v79 = vunpack.c.l.b16 %v64
    %v80 = vunpack.c.l.b16 %v65
    %v81 = vunpack.c.l.b16 %v66
    %v82 = vpack.c.b16 %v79, %v78
    %v83 = vpack.c.b16 %v81, %v80
    %vm86 = vcmask 261120
    %v88 = vsel %vm86, %v62, 0
    %90 = vmatprep.subr.bf16.mxu0 0
    %91 = vmatpush1.bf16.msra.mxu0 0
    %92 = vmatprep.subr.bf16.mxu0 0
    %93 = vmatpush1.bf16.msra.mxu0 0
    %94 = vmatprep.subr.bf16.mxu0 0
    %95 = vmatpush1.bf16.msra.mxu0 0
    %96 = vmatprep.subr.bf16.mxu0 0
    %97 = vmatpush1.bf16.msra.mxu0 0
    %98 = vmatprep.subr.bf16.mxu0 0
    %99 = vmatpush1.bf16.msra.mxu0 0
    %100 = vmatprep.subr.bf16.mxu0 0
    %101 = vmatpush1.bf16.msra.mxu0 0
    %102 = vmatprep.subr.bf16.mxu0 0
    %103 = vmatpush1.bf16.msra.mxu0 %v83
    %104 = vmatprep.subr.bf16.mxu0 0
    %105 = vmatpush1.bf16.msra.mxu0 %v82
    %106 = vmatprep.subr.bf16.mxu0 0
    %107 = vmatpush2.bf16.msra.mxu0 0
    %108 = vmatprep.subr.bf16.mxu0 0
    %109 = vmatpush2.bf16.msra.mxu0 0
    %110 = vmatprep.subr.bf16.mxu0 0
    %111 = vmatpush2.bf16.msra.mxu0 0
    %112 = vmatprep.subr.bf16.mxu0 0
    %113 = vmatpush2.bf16.msra.mxu0 0
    %114 = vmatprep.subr.bf16.mxu0 0
    %115 = vmatpush2.bf16.msra.mxu0 0
    %116 = vmatprep.subr.bf16.mxu0 0
    %117 = vmatpush2.bf16.msra.mxu0 0
    %118 = vmatprep.subr.bf16.mxu0 0
    %119 = vmatpush2.bf16.msra.mxu0 0
    %120 = vmatprep.subr.bf16.mxu0 0
    %121 = vmatpush2.bf16.msra.mxu0 0
    %122 = vmatprep.mubr.bf16.mxu0 0
    %123 = vmatmul.mubr.bf16.gmra.mxu0 %v88
    %v124 = vpop.f32.mrf.mxu0
    %v125 = vadd.f32 %v72, %v124
    %v126 = vpop.f32.mrf.mxu0
    %v127 = vpop.f32.mrf.mxu0
    %v128 = vpop.f32.mrf.mxu0
    %129 = vdwg.mxu0
    %v130 = vmax.f32 %v125, 0.0
    %v131 = vpack.c.bf16 %v130, %v130
    %132 = vst [vmem:[#allocation2] sm:$0x1] %v131
    %v133 = vld [vmem:[#allocation2] sm:$0x1]
    %v134 = vld [vmem:[#allocation8] sm:$0xf]
    %v135 = vld [vmem:[#allocation8 + $0x4] sm:$0xf]
    %v136 = vld [vmem:[#allocation8 + $0x8] sm:$0xf]
    %v137 = vld [vmem:[#allocation8 + $0xc] sm:$0xf]
    %v138 = vld [vmem:[#allocation8 + $0x10] sm:$0xf]
    %v139 = vld [vmem:[#allocation8 + $0x14] sm:$0xf]
    %v140 = vld [vmem:[#allocation8 + $0x18] sm:$0xf]
    %v141 = vld [vmem:[#allocation8 + $0x1c] sm:$0xf]
    %v142 = vld [vmem:[#allocation8 + $0x20] sm:$0xf]
    %v143 = vld [vmem:[#allocation8 + $0x24] sm:$0xf]
    %v144 = vld [vmem:[#allocation8 + $0x28] sm:$0xf]
    %v145 = vld [vmem:[#allocation8 + $0x2c] sm:$0xf]
    %v146 = vld [vmem:[#allocation8 + $0x30] sm:$0xf]
    %v147 = vld [vmem:[#allocation8 + $0x34] sm:$0xf]
    %v148 = vld [vmem:[#allocation8 + $0x38] sm:$0xf]
    %v149 = vld [vmem:[#allocation8 + $0x3c] sm:$0xf]
    %v166 = vunpack.c.l.b16 %v134
    %v167 = vunpack.c.l.b16 %v135
    %v168 = vunpack.c.l.b16 %v136
    %v169 = vunpack.c.l.b16 %v137
    %v170 = vunpack.c.l.b16 %v138
    %v171 = vunpack.c.l.b16 %v139
    %v172 = vunpack.c.l.b16 %v140
    %v173 = vunpack.c.l.b16 %v141
    %v174 = vunpack.c.l.b16 %v142
    %v175 = vunpack.c.l.b16 %v143
    %v176 = vunpack.c.l.b16 %v144
    %v177 = vunpack.c.l.b16 %v145
    %v178 = vunpack.c.l.b16 %v146
    %v179 = vunpack.c.l.b16 %v147
    %v180 = vunpack.c.l.b16 %v148
    %v181 = vunpack.c.l.b16 %v149
    %v182 = vpack.c.b16 %v167, %v166
    %v183 = vpack.c.b16 %v169, %v168
    %v184 = vpack.c.b16 %v171, %v170
    %v185 = vpack.c.b16 %v173, %v172
    %v186 = vpack.c.b16 %v175, %v174
    %v187 = vpack.c.b16 %v177, %v176
    %v188 = vpack.c.b16 %v179, %v178
    %v189 = vpack.c.b16 %v181, %v180
    %198 = vmatprep.subr.bf16.mxu0 0
    %199 = vmatpush1.bf16.msra.mxu0 %v189
    %200 = vmatprep.subr.bf16.mxu0 0
    %201 = vmatpush1.bf16.msra.mxu0 %v188
    %202 = vmatprep.subr.bf16.mxu0 0
    %203 = vmatpush1.bf16.msra.mxu0 %v187
    %204 = vmatprep.subr.bf16.mxu0 0
    %205 = vmatpush1.bf16.msra.mxu0 %v186
    %206 = vmatprep.subr.bf16.mxu0 0
    %207 = vmatpush1.bf16.msra.mxu0 %v185
    %208 = vmatprep.subr.bf16.mxu0 0
    %209 = vmatpush1.bf16.msra.mxu0 %v184
    %210 = vmatprep.subr.bf16.mxu0 0
    %211 = vmatpush1.bf16.msra.mxu0 %v183
    %212 = vmatprep.subr.bf16.mxu0 0
    %213 = vmatpush1.bf16.msra.mxu0 %v182
    %214 = vmatprep.subr.bf16.mxu0 0
    %215 = vmatpush2.bf16.msra.mxu0 0
    %216 = vmatprep.subr.bf16.mxu0 0
    %217 = vmatpush2.bf16.msra.mxu0 0
    %218 = vmatprep.subr.bf16.mxu0 0
    %219 = vmatpush2.bf16.msra.mxu0 0
    %220 = vmatprep.subr.bf16.mxu0 0
    %221 = vmatpush2.bf16.msra.mxu0 0
    %222 = vmatprep.subr.bf16.mxu0 0
    %223 = vmatpush2.bf16.msra.mxu0 0
    %224 = vmatprep.subr.bf16.mxu0 0
    %225 = vmatpush2.bf16.msra.mxu0 0
    %226 = vmatprep.subr.bf16.mxu0 0
    %227 = vmatpush2.bf16.msra.mxu0 0
    %228 = vmatprep.subr.bf16.mxu0 0
    %229 = vmatpush2.bf16.msra.mxu0 0
    %230 = vmatprep.mubr.bf16.mxu0 0
    %231 = vmatmul.mubr.bf16.gmra.mxu0 %v133
    %v232 = vpop.f32.mrf.mxu0
    %v233 = vadd.f32 0.0, %v232
    %v234 = vpop.f32.mrf.mxu0
    %v235 = vpop.f32.mrf.mxu0
    %v236 = vpop.f32.mrf.mxu0
    %237 = vdwg.mxu0
    %v238 = vld [vmem:[%s4] sm:$0x1]
    %v240 = vlaneseq
    %v241 = vshrl.u32 %v240, 7
    %v242 = vsub.s32 0, %v241
    %v243 = vrot.slane %v238, %v242
    %v245 = vadd.f32 %v233, %v243
    %vm246 = vcmask 25600
    %247 = vst.msk [vmem:[#allocation9] sm:$0x3] %vm246, %v245
    // Predicated region
    $region34: #{tpu_custom_call.1} parent=1 // pred_check
      _
    $region35: #{tpu_custom_call.1} parent=1 // pred_check_branch
      %249 = sbr.rel (0) target = $region37
    $region36: #{tpu_custom_call.1} parent=1 // pred_region
      %s251 = ssub.s32 32, 32
      %252 = vsyncadd [#allocation5], %s251
      %s254 = sshll.u32 [#allocation9], 4
      %s255 = int_to_ptr.vmem [resolvable:$true] %s254
      %257 = dma.vmem_to_hbm [thread:$0]  %s255, 32, %s5, [#allocation5]
    $region37: #{tpu_custom_call.1} parent=1 // pred_fallthru
      _
    // Predicated region
    $region38: #{tpu_custom_call.1} parent=1 // pred_check
      _
    $region39: #{tpu_custom_call.1} parent=1 // pred_check_branch
      %259 = sbr.rel (0) target = $region41
    $region40: #{tpu_custom_call.1} parent=1 // pred_region
      %260 = dma.done [#allocation5], 32
    $region41: #{tpu_custom_call.1} parent=1 // pred_fallthru
      _
    %261 = vsyncpa [#allocation4], 1
    %262 = vsyncpa [#allocation7], 1
    %263 = vsyncpa [#allocation5], 1

</llo_original>
